<compile_context>
chip_gen: v6e
topology: v6e:2x2x1
jax: 0.10.0
libtpu: 0.0.40
codegen_flags: <defaults>
</compile_context>

<pallas_src>
import functools

import jax
import jax.numpy as jnp
from jax.experimental import pallas as pl
from jax.experimental.pallas import tpu as pltpu


def _ga_kernel(x_ref, w_ref, bias_ref, o_ref, *, threshold, factor, c2):
    # x_ref:    (nb, C, t_h, W)   input tile (native dtype)
    # w_ref:    (C2, 3)  in SMEM  BN-folded conv weight (read as scalars)
    # bias_ref: (C2,)    in SMEM  BN-folded bias
    # o_ref:    (nb, C2, t_h, W)  output tile
    r = x_ref[:, 0, :, :].astype(jnp.float32)
    g = x_ref[:, 1, :, :].astype(jnp.float32)
    b = x_ref[:, 2, :, :].astype(jnp.float32)

    # Green-boost mask. `factor` was replaced by 1.0 on the host if it equals 0,
    # matching `adjusted_mask[adjusted_mask == 0] = 1`.
    adj = jnp.where(g - r > threshold, jnp.float32(factor), jnp.float32(1.0))
    r = r * adj
    g = g * adj
    b = b * adj

    # 1x1 conv over 3 channels as VPU scalar-broadcast mul/adds (K=3 / M=C2 is a
    # degenerate MXU shape; this stays in the VALU slots and is hidden under DMA).
    # Intended for small C2 (the module's use case).
    for c in range(c2):
        z = (w_ref[c, 0] * r + w_ref[c, 1] * g + w_ref[c, 2] * b) + bias_ref[c]
        # SiLU with a single EUP op per element: sigmoid(z) = 0.5*(tanh(z/2)+1)
        o_ref[:, c, :, :] = (z * (0.5 * jnp.tanh(0.5 * z) + 0.5)).astype(o_ref.dtype)


def ga_forward(x_nchw, w, gamma, beta, run_mean, run_var,
               threshold=0.0392, factor=1.2, eps=1e-5, out_dtype=None):
    """Forward pass of GA (eval mode). x_nchw: (N, C>=3, H, W); w: (C2, 3, 1, 1).

    out_dtype=jnp.bfloat16 halves the (dominant) output HBM traffic when the
    consumer tolerates it; compute stays f32 either way.
    """
    N, C, H, W = x_nchw.shape
    assert C >= 3, "GA needs at least 3 input channels (RGB)"
    C2 = w.shape[0]
    if out_dtype is None:
        out_dtype = x_nchw.dtype

    # Only pre-slice when C is much larger than 3 (for small C, reading the extra
    # channels in-kernel is far cheaper than an extra full HBM pass for the slice).
    if C > 8:
        x_nchw = x_nchw[:, :3]
        C = 3

    # factor == 0 edge case: mask*0 == 0, which the PyTorch code resets to 1.
    eff_factor = float(factor)
    if eff_factor == 0.0:
        eff_factor = 1.0

    # Fold BatchNorm (eval) into the conv: scale into the weight, bias kept separate.
    inv_std = 1.0 / jnp.sqrt(run_var.astype(jnp.float32) + eps)
    scale = gamma.astype(jnp.float32) * inv_std                       # (C2,)
    bias = beta.astype(jnp.float32) - run_mean.astype(jnp.float32) * scale
    w_folded = w.reshape(C2, 3).astype(jnp.float32) * scale[:, None]  # (C2, 3)

    in_item = jnp.dtype(x_nchw.dtype).itemsize
    out_item = jnp.dtype(out_dtype).itemsize

    # --- generation-aware tile sizing -----------------------------------------
    try:
        vmem_cap = int(pltpu.get_tpu_info().vmem_capacity_bytes)
    except Exception:
        vmem_cap = 64 << 20          # v7x per-TensorCore VMEM (smallest of the gens)
    vmem_cap = max(vmem_cap, 32 << 20)
    # Per-pixel VMEM: double-buffered in+out tiles plus a margin for the f32
    # intermediates (r, g, b, adj, per-channel z) the compiler materializes.
    per_pixel = 2 * (C * in_item + C2 * out_item) + 8 * 4
    max_pixels = max(1024, (vmem_cap // 2) // per_pixel)
    target_pixels = max(1024, min(131072, max_pixels))

    # --- tiling: full W on lanes, tile over (batch, H) -------------------------
    if H * W <= target_pixels:
        # Small images: whole image per block; pack several batch elements per
        # grid step to amortize the ~0.35us per-step overhead.
        t_h = H
        max_nb = max(1, min(N, target_pixels // (H * W)))
        nb = 1
        for d in range(1, max_nb + 1):          # largest divisor of N <= max_nb
            if N % d == 0:
                nb = d
    else:
        nb = 1
        t_h = min(H, max(8, ((target_pixels // max(W, 1)) // 8) * 8))
        # Prefer a (multiple-of-8) divisor of H near the target so every block is
        # full; otherwise keep t_h and let Pallas mask the ragged last block.
        lower = max(8, (2 * t_h) // 3)
        for cand in range(t_h, lower - 1, -8):
            if H % cand == 0:
                t_h = cand
                break

    grid = (N // nb, pl.cdiv(H, t_h))

    io_block = nb * t_h * W * (C * in_item + C2 * out_item)
    vmem_limit = int(min((vmem_cap * 9) // 10, 2 * io_block + (24 << 20)))
    vmem_limit = int(min(max(vmem_limit, 32 << 20), (vmem_cap * 9) // 10))

    kernel = functools.partial(_ga_kernel, threshold=float(threshold),
                               factor=eff_factor, c2=C2)

    cost = pl.CostEstimate(
        flops=int(N * H * W * (7 * C2 + 6)),
        transcendentals=int(N * H * W * C2),
        bytes_accessed=int(N * H * W * (C * in_item + C2 * out_item) + C2 * 16),
    )

    out = pl.pallas_call(
        kernel,
        out_shape=jax.ShapeDtypeStruct((N, C2, H, W), out_dtype),
        grid_spec=pltpu.PrefetchScalarGridSpec(
            num_scalar_prefetch=0,
            grid=grid,
            in_specs=[
                pl.BlockSpec((nb, C, t_h, W), lambda bi, hi: (bi, 0, hi, 0)),
                pl.BlockSpec(memory_space=pltpu.MemorySpace.SMEM),   # folded weight
                pl.BlockSpec(memory_space=pltpu.MemorySpace.SMEM),   # folded bias
            ],
            out_specs=pl.BlockSpec((nb, C2, t_h, W), lambda bi, hi: (bi, 0, hi, 0)),
        ),
        compiler_params=pltpu.CompilerParams(
            dimension_semantics=("parallel", "parallel"),
            vmem_limit_bytes=vmem_limit),
        cost_estimate=cost,
    )(x_nchw, w_folded, bias)

    return out


if __name__ == "__main__":
    # Small shapes consistent with the module: first 3 channels are RGB, conv is 3->C2.
    N, C_in, H, W = 2, 4, 16, 16
    C2 = 8
    threshold, factor = 0.0392, 1.2

    key = jax.random.PRNGKey(0)
    k_x, k_w, k_g, k_b, k_m, k_v = jax.random.split(key, 6)

    x = jax.random.normal(k_x, (N, C_in, H, W), dtype=jnp.float32)

    # Conv2d weight (C2, 3, 1, 1), bias=False; BN affine params / running stats.
    w = jax.random.normal(k_w, (C2, 3, 1, 1), dtype=jnp.float32) * 0.1
    gamma = 1.0 + 0.1 * jax.random.normal(k_g, (C2,), dtype=jnp.float32)
    beta = 0.1 * jax.random.normal(k_b, (C2,), dtype=jnp.float32)
    run_mean = 0.05 * jax.random.normal(k_m, (C2,), dtype=jnp.float32)
    run_var = jnp.abs(1.0 + 0.1 * jax.random.normal(k_v, (C2,), dtype=jnp.float32))

    out = ga_forward(x, w, gamma, beta, run_mean, run_var,
                     threshold=threshold, factor=factor)
    jax.block_until_ready(out)

    # Pure-JAX reference (exact f32 elementwise conv, no MXU rounding).
    r, g, b = x[:, 0], x[:, 1], x[:, 2]
    adj = jnp.where(g - r > threshold, jnp.float32(factor), jnp.float32(1.0))
    ra, ga_, ba = r * adj, g * adj, b * adj
    wf = w.reshape(C2, 3)
    conv = (wf[:, 0][None, :, None, None] * ra[:, None]
            + wf[:, 1][None, :, None, None] * ga_[:, None]
            + wf[:, 2][None, :, None, None] * ba[:, None])
    scale = gamma / jnp.sqrt(run_var + 1e-5)
    bn = conv * scale[None, :, None, None] + (beta - run_mean * scale)[None, :, None, None]
    ref = bn * jax.nn.sigmoid(bn)

    assert out.shape == (N, C2, H, W)
    assert jnp.allclose(out, ref, atol=1e-4, rtol=1e-4), "mismatch vs reference"

    print("KERNEL_OK")
</pallas_src>

<mosaic_0001>
module attributes {stable_mosaic.version = 11 : i64} {
  func.func @_ga_kernel(%arg0: i32, %arg1: i32, %arg2: memref<2x4x16x16xf32, #tpu.memory_space<vmem>>, %arg3: memref<8x3xf32, #tpu.memory_space<smem>>, %arg4: memref<8xf32, #tpu.memory_space<smem>>, %arg5: memref<2x8x16x16xf32, #tpu.memory_space<vmem>>) attributes {dimension_semantics = [#tpu.dimension_semantics<parallel>, #tpu.dimension_semantics<parallel>], iteration_bounds = array<i64: 1, 1>, scalar_prefetch = 0 : i64, scratch_operands = 0 : i64, tpu.core_type = #tpu.core_type<tc>, window_params = [{transform_indices = @transform_0, window_bounds = array<i64: 2, 4, 16, 16>}, {transform_indices = @transform_1, window_bounds = array<i64: 8, 3>}, {transform_indices = @transform_2, window_bounds = array<i64: 8>}, {transform_indices = @transform_3, window_bounds = array<i64: 2, 8, 16, 16>}]} {
    %c0 = arith.constant 0 : index
    %c0_0 = arith.constant 0 : index
    %c0_1 = arith.constant 0 : index
    %c0_2 = arith.constant 0 : index
    %0 = vector.load %arg2[%c0, %c0_0, %c0_1, %c0_2] : memref<2x4x16x16xf32, #tpu.memory_space<vmem>>, vector<2x1x16x16xf32>
    %1 = vector.shape_cast %0 : vector<2x1x16x16xf32> to vector<2x16x16xf32>
    %c0_3 = arith.constant 0 : index
    %c1 = arith.constant 1 : index
    %c0_4 = arith.constant 0 : index
    %c0_5 = arith.constant 0 : index
    %2 = vector.load %arg2[%c0_3, %c1, %c0_4, %c0_5] : memref<2x4x16x16xf32, #tpu.memory_space<vmem>>, vector<2x1x16x16xf32>
    %3 = vector.shape_cast %2 : vector<2x1x16x16xf32> to vector<2x16x16xf32>
    %c0_6 = arith.constant 0 : index
    %c2 = arith.constant 2 : index
    %c0_7 = arith.constant 0 : index
    %c0_8 = arith.constant 0 : index
    %4 = vector.load %arg2[%c0_6, %c2, %c0_7, %c0_8] : memref<2x4x16x16xf32, #tpu.memory_space<vmem>>, vector<2x1x16x16xf32>
    %5 = vector.shape_cast %4 : vector<2x1x16x16xf32> to vector<2x16x16xf32>
    %6 = arith.subf %3, %1 : vector<2x16x16xf32>
    %cst = arith.constant 3.920000e-02 : f32
    %7 = vector.broadcast %cst : f32 to vector<2x16x16xf32>
    %8 = arith.cmpf ogt, %6, %7 : vector<2x16x16xf32>
    %cst_9 = arith.constant 1.200000e+00 : f32
    %cst_10 = arith.constant 1.000000e+00 : f32
    %9 = vector.broadcast %cst_9 : f32 to vector<2x16x16xf32>
    %10 = vector.broadcast %cst_10 : f32 to vector<2x16x16xf32>
    %11 = arith.select %8, %9, %10 : vector<2x16x16xi1>, vector<2x16x16xf32>
    %12 = arith.mulf %1, %11 : vector<2x16x16xf32>
    %13 = arith.mulf %3, %11 : vector<2x16x16xf32>
    %14 = arith.mulf %5, %11 : vector<2x16x16xf32>
    %c0_11 = arith.constant 0 : index
    %c0_12 = arith.constant 0 : index
    %15 = memref.load %arg3[%c0_11, %c0_12] : memref<8x3xf32, #tpu.memory_space<smem>>
    %16 = vector.broadcast %15 : f32 to vector<2x16x16xf32>
    %17 = arith.mulf %16, %12 : vector<2x16x16xf32>
    %c0_13 = arith.constant 0 : index
    %c1_14 = arith.constant 1 : index
    %18 = memref.load %arg3[%c0_13, %c1_14] : memref<8x3xf32, #tpu.memory_space<smem>>
    %19 = vector.broadcast %18 : f32 to vector<2x16x16xf32>
    %20 = arith.mulf %19, %13 : vector<2x16x16xf32>
    %21 = arith.addf %17, %20 : vector<2x16x16xf32>
    %c0_15 = arith.constant 0 : index
    %c2_16 = arith.constant 2 : index
    %22 = memref.load %arg3[%c0_15, %c2_16] : memref<8x3xf32, #tpu.memory_space<smem>>
    %23 = vector.broadcast %22 : f32 to vector<2x16x16xf32>
    %24 = arith.mulf %23, %14 : vector<2x16x16xf32>
    %25 = arith.addf %21, %24 : vector<2x16x16xf32>
    %c0_17 = arith.constant 0 : index
    %26 = memref.load %arg4[%c0_17] : memref<8xf32, #tpu.memory_space<smem>>
    %27 = vector.broadcast %26 : f32 to vector<2x16x16xf32>
    %28 = arith.addf %25, %27 : vector<2x16x16xf32>
    %cst_18 = arith.constant 5.000000e-01 : f32
    %29 = vector.broadcast %cst_18 : f32 to vector<2x16x16xf32>
    %30 = arith.mulf %29, %28 : vector<2x16x16xf32>
    %31 = math.tanh %30 : vector<2x16x16xf32>
    %cst_19 = arith.constant 5.000000e-01 : f32
    %32 = vector.broadcast %cst_19 : f32 to vector<2x16x16xf32>
    %33 = arith.mulf %32, %31 : vector<2x16x16xf32>
    %cst_20 = arith.constant 5.000000e-01 : f32
    %34 = vector.broadcast %cst_20 : f32 to vector<2x16x16xf32>
    %35 = arith.addf %33, %34 : vector<2x16x16xf32>
    %36 = arith.mulf %28, %35 : vector<2x16x16xf32>
    %c0_21 = arith.constant 0 : index
    %c0_22 = arith.constant 0 : index
    %c0_23 = arith.constant 0 : index
    %c0_24 = arith.constant 0 : index
    %37 = vector.load %arg5[%c0_21, %c0_22, %c0_23, %c0_24] : memref<2x8x16x16xf32, #tpu.memory_space<vmem>>, vector<2x1x16x16xf32>
    %38 = vector.shape_cast %37 : vector<2x1x16x16xf32> to vector<2x16x16xf32>
    %39 = vector.shape_cast %36 : vector<2x16x16xf32> to vector<2x1x16x16xf32>
    tpu.vector_store %arg5[%c0_21, %c0_22, %c0_23, %c0_24], %39 {strides = array<i32>} : memref<2x8x16x16xf32, #tpu.memory_space<vmem>>, vector<2x1x16x16xf32>,
    %c1_25 = arith.constant 1 : index
    %c0_26 = arith.constant 0 : index
    %40 = memref.load %arg3[%c1_25, %c0_26] : memref<8x3xf32, #tpu.memory_space<smem>>
    %41 = vector.broadcast %40 : f32 to vector<2x16x16xf32>
    %42 = arith.mulf %41, %12 : vector<2x16x16xf32>
    %c1_27 = arith.constant 1 : index
    %c1_28 = arith.constant 1 : index
    %43 = memref.load %arg3[%c1_27, %c1_28] : memref<8x3xf32, #tpu.memory_space<smem>>
    %44 = vector.broadcast %43 : f32 to vector<2x16x16xf32>
    %45 = arith.mulf %44, %13 : vector<2x16x16xf32>
    %46 = arith.addf %42, %45 : vector<2x16x16xf32>
    %c1_29 = arith.constant 1 : index
    %c2_30 = arith.constant 2 : index
    %47 = memref.load %arg3[%c1_29, %c2_30] : memref<8x3xf32, #tpu.memory_space<smem>>
    %48 = vector.broadcast %47 : f32 to vector<2x16x16xf32>
    %49 = arith.mulf %48, %14 : vector<2x16x16xf32>
    %50 = arith.addf %46, %49 : vector<2x16x16xf32>
    %c1_31 = arith.constant 1 : index
    %51 = memref.load %arg4[%c1_31] : memref<8xf32, #tpu.memory_space<smem>>
    %52 = vector.broadcast %51 : f32 to vector<2x16x16xf32>
    %53 = arith.addf %50, %52 : vector<2x16x16xf32>
    %cst_32 = arith.constant 5.000000e-01 : f32
    %54 = vector.broadcast %cst_32 : f32 to vector<2x16x16xf32>
    %55 = arith.mulf %54, %53 : vector<2x16x16xf32>
    %56 = math.tanh %55 : vector<2x16x16xf32>
    %cst_33 = arith.constant 5.000000e-01 : f32
    %57 = vector.broadcast %cst_33 : f32 to vector<2x16x16xf32>
    %58 = arith.mulf %57, %56 : vector<2x16x16xf32>
    %cst_34 = arith.constant 5.000000e-01 : f32
    %59 = vector.broadcast %cst_34 : f32 to vector<2x16x16xf32>
    %60 = arith.addf %58, %59 : vector<2x16x16xf32>
    %61 = arith.mulf %53, %60 : vector<2x16x16xf32>
    %c0_35 = arith.constant 0 : index
    %c1_36 = arith.constant 1 : index
    %c0_37 = arith.constant 0 : index
    %c0_38 = arith.constant 0 : index
    %62 = vector.load %arg5[%c0_35, %c1_36, %c0_37, %c0_38] : memref<2x8x16x16xf32, #tpu.memory_space<vmem>>, vector<2x1x16x16xf32>
    %63 = vector.shape_cast %62 : vector<2x1x16x16xf32> to vector<2x16x16xf32>
    %64 = vector.shape_cast %61 : vector<2x16x16xf32> to vector<2x1x16x16xf32>
    tpu.vector_store %arg5[%c0_35, %c1_36, %c0_37, %c0_38], %64 {strides = array<i32>} : memref<2x8x16x16xf32, #tpu.memory_space<vmem>>, vector<2x1x16x16xf32>,
    %c2_39 = arith.constant 2 : index
    %c0_40 = arith.constant 0 : index
    %65 = memref.load %arg3[%c2_39, %c0_40] : memref<8x3xf32, #tpu.memory_space<smem>>
    %66 = vector.broadcast %65 : f32 to vector<2x16x16xf32>
    %67 = arith.mulf %66, %12 : vector<2x16x16xf32>
    %c2_41 = arith.constant 2 : index
    %c1_42 = arith.constant 1 : index
    %68 = memref.load %arg3[%c2_41, %c1_42] : memref<8x3xf32, #tpu.memory_space<smem>>
    %69 = vector.broadcast %68 : f32 to vector<2x16x16xf32>
    %70 = arith.mulf %69, %13 : vector<2x16x16xf32>
    %71 = arith.addf %67, %70 : vector<2x16x16xf32>
    %c2_43 = arith.constant 2 : index
    %c2_44 = arith.constant 2 : index
    %72 = memref.load %arg3[%c2_43, %c2_44] : memref<8x3xf32, #tpu.memory_space<smem>>
    %73 = vector.broadcast %72 : f32 to vector<2x16x16xf32>
    %74 = arith.mulf %73, %14 : vector<2x16x16xf32>
    %75 = arith.addf %71, %74 : vector<2x16x16xf32>
    %c2_45 = arith.constant 2 : index
    %76 = memref.load %arg4[%c2_45] : memref<8xf32, #tpu.memory_space<smem>>
    %77 = vector.broadcast %76 : f32 to vector<2x16x16xf32>
    %78 = arith.addf %75, %77 : vector<2x16x16xf32>
    %cst_46 = arith.constant 5.000000e-01 : f32
    %79 = vector.broadcast %cst_46 : f32 to vector<2x16x16xf32>
    %80 = arith.mulf %79, %78 : vector<2x16x16xf32>
    %81 = math.tanh %80 : vector<2x16x16xf32>
    %cst_47 = arith.constant 5.000000e-01 : f32
    %82 = vector.broadcast %cst_47 : f32 to vector<2x16x16xf32>
    %83 = arith.mulf %82, %81 : vector<2x16x16xf32>
    %cst_48 = arith.constant 5.000000e-01 : f32
    %84 = vector.broadcast %cst_48 : f32 to vector<2x16x16xf32>
    %85 = arith.addf %83, %84 : vector<2x16x16xf32>
    %86 = arith.mulf %78, %85 : vector<2x16x16xf32>
    %c0_49 = arith.constant 0 : index
    %c2_50 = arith.constant 2 : index
    %c0_51 = arith.constant 0 : index
    %c0_52 = arith.constant 0 : index
    %87 = vector.load %arg5[%c0_49, %c2_50, %c0_51, %c0_52] : memref<2x8x16x16xf32, #tpu.memory_space<vmem>>, vector<2x1x16x16xf32>
    %88 = vector.shape_cast %87 : vector<2x1x16x16xf32> to vector<2x16x16xf32>
    %89 = vector.shape_cast %86 : vector<2x16x16xf32> to vector<2x1x16x16xf32>
    tpu.vector_store %arg5[%c0_49, %c2_50, %c0_51, %c0_52], %89 {strides = array<i32>} : memref<2x8x16x16xf32, #tpu.memory_space<vmem>>, vector<2x1x16x16xf32>,
    %c3 = arith.constant 3 : index
    %c0_53 = arith.constant 0 : index
    %90 = memref.load %arg3[%c3, %c0_53] : memref<8x3xf32, #tpu.memory_space<smem>>
    %91 = vector.broadcast %90 : f32 to vector<2x16x16xf32>
    %92 = arith.mulf %91, %12 : vector<2x16x16xf32>
    %c3_54 = arith.constant 3 : index
    %c1_55 = arith.constant 1 : index
    %93 = memref.load %arg3[%c3_54, %c1_55] : memref<8x3xf32, #tpu.memory_space<smem>>
    %94 = vector.broadcast %93 : f32 to vector<2x16x16xf32>
    %95 = arith.mulf %94, %13 : vector<2x16x16xf32>
    %96 = arith.addf %92, %95 : vector<2x16x16xf32>
    %c3_56 = arith.constant 3 : index
    %c2_57 = arith.constant 2 : index
    %97 = memref.load %arg3[%c3_56, %c2_57] : memref<8x3xf32, #tpu.memory_space<smem>>
    %98 = vector.broadcast %97 : f32 to vector<2x16x16xf32>
    %99 = arith.mulf %98, %14 : vector<2x16x16xf32>
    %100 = arith.addf %96, %99 : vector<2x16x16xf32>
    %c3_58 = arith.constant 3 : index
    %101 = memref.load %arg4[%c3_58] : memref<8xf32, #tpu.memory_space<smem>>
    %102 = vector.broadcast %101 : f32 to vector<2x16x16xf32>
    %103 = arith.addf %100, %102 : vector<2x16x16xf32>
    %cst_59 = arith.constant 5.000000e-01 : f32
    %104 = vector.broadcast %cst_59 : f32 to vector<2x16x16xf32>
    %105 = arith.mulf %104, %103 : vector<2x16x16xf32>
    %106 = math.tanh %105 : vector<2x16x16xf32>
    %cst_60 = arith.constant 5.000000e-01 : f32
    %107 = vector.broadcast %cst_60 : f32 to vector<2x16x16xf32>
    %108 = arith.mulf %107, %106 : vector<2x16x16xf32>
    %cst_61 = arith.constant 5.000000e-01 : f32
    %109 = vector.broadcast %cst_61 : f32 to vector<2x16x16xf32>
    %110 = arith.addf %108, %109 : vector<2x16x16xf32>
    %111 = arith.mulf %103, %110 : vector<2x16x16xf32>
    %c0_62 = arith.constant 0 : index
    %c3_63 = arith.constant 3 : index
    %c0_64 = arith.constant 0 : index
    %c0_65 = arith.constant 0 : index
    %112 = vector.load %arg5[%c0_62, %c3_63, %c0_64, %c0_65] : memref<2x8x16x16xf32, #tpu.memory_space<vmem>>, vector<2x1x16x16xf32>
    %113 = vector.shape_cast %112 : vector<2x1x16x16xf32> to vector<2x16x16xf32>
    %114 = vector.shape_cast %111 : vector<2x16x16xf32> to vector<2x1x16x16xf32>
    tpu.vector_store %arg5[%c0_62, %c3_63, %c0_64, %c0_65], %114 {strides = array<i32>} : memref<2x8x16x16xf32, #tpu.memory_space<vmem>>, vector<2x1x16x16xf32>,
    %c4 = arith.constant 4 : index
    %c0_66 = arith.constant 0 : index
    %115 = memref.load %arg3[%c4, %c0_66] : memref<8x3xf32, #tpu.memory_space<smem>>
    %116 = vector.broadcast %115 : f32 to vector<2x16x16xf32>
    %117 = arith.mulf %116, %12 : vector<2x16x16xf32>
    %c4_67 = arith.constant 4 : index
    %c1_68 = arith.constant 1 : index
    %118 = memref.load %arg3[%c4_67, %c1_68] : memref<8x3xf32, #tpu.memory_space<smem>>
    %119 = vector.broadcast %118 : f32 to vector<2x16x16xf32>
    %120 = arith.mulf %119, %13 : vector<2x16x16xf32>
    %121 = arith.addf %117, %120 : vector<2x16x16xf32>
    %c4_69 = arith.constant 4 : index
    %c2_70 = arith.constant 2 : index
    %122 = memref.load %arg3[%c4_69, %c2_70] : memref<8x3xf32, #tpu.memory_space<smem>>
    %123 = vector.broadcast %122 : f32 to vector<2x16x16xf32>
    %124 = arith.mulf %123, %14 : vector<2x16x16xf32>
    %125 = arith.addf %121, %124 : vector<2x16x16xf32>
    %c4_71 = arith.constant 4 : index
    %126 = memref.load %arg4[%c4_71] : memref<8xf32, #tpu.memory_space<smem>>
    %127 = vector.broadcast %126 : f32 to vector<2x16x16xf32>
    %128 = arith.addf %125, %127 : vector<2x16x16xf32>
    %cst_72 = arith.constant 5.000000e-01 : f32
    %129 = vector.broadcast %cst_72 : f32 to vector<2x16x16xf32>
    %130 = arith.mulf %129, %128 : vector<2x16x16xf32>
    %131 = math.tanh %130 : vector<2x16x16xf32>
    %cst_73 = arith.constant 5.000000e-01 : f32
    %132 = vector.broadcast %cst_73 : f32 to vector<2x16x16xf32>
    %133 = arith.mulf %132, %131 : vector<2x16x16xf32>
    %cst_74 = arith.constant 5.000000e-01 : f32
    %134 = vector.broadcast %cst_74 : f32 to vector<2x16x16xf32>
    %135 = arith.addf %133, %134 : vector<2x16x16xf32>
    %136 = arith.mulf %128, %135 : vector<2x16x16xf32>
    %c0_75 = arith.constant 0 : index
    %c4_76 = arith.constant 4 : index
    %c0_77 = arith.constant 0 : index
    %c0_78 = arith.constant 0 : index
    %137 = vector.load %arg5[%c0_75, %c4_76, %c0_77, %c0_78] : memref<2x8x16x16xf32, #tpu.memory_space<vmem>>, vector<2x1x16x16xf32>
    %138 = vector.shape_cast %137 : vector<2x1x16x16xf32> to vector<2x16x16xf32>
    %139 = vector.shape_cast %136 : vector<2x16x16xf32> to vector<2x1x16x16xf32>
    tpu.vector_store %arg5[%c0_75, %c4_76, %c0_77, %c0_78], %139 {strides = array<i32>} : memref<2x8x16x16xf32, #tpu.memory_space<vmem>>, vector<2x1x16x16xf32>,
    %c5 = arith.constant 5 : index
    %c0_79 = arith.constant 0 : index
    %140 = memref.load %arg3[%c5, %c0_79] : memref<8x3xf32, #tpu.memory_space<smem>>
    %141 = vector.broadcast %140 : f32 to vector<2x16x16xf32>
    %142 = arith.mulf %141, %12 : vector<2x16x16xf32>
    %c5_80 = arith.constant 5 : index
    %c1_81 = arith.constant 1 : index
    %143 = memref.load %arg3[%c5_80, %c1_81] : memref<8x3xf32, #tpu.memory_space<smem>>
    %144 = vector.broadcast %143 : f32 to vector<2x16x16xf32>
    %145 = arith.mulf %144, %13 : vector<2x16x16xf32>
    %146 = arith.addf %142, %145 : vector<2x16x16xf32>
    %c5_82 = arith.constant 5 : index
    %c2_83 = arith.constant 2 : index
    %147 = memref.load %arg3[%c5_82, %c2_83] : memref<8x3xf32, #tpu.memory_space<smem>>
    %148 = vector.broadcast %147 : f32 to vector<2x16x16xf32>
    %149 = arith.mulf %148, %14 : vector<2x16x16xf32>
    %150 = arith.addf %146, %149 : vector<2x16x16xf32>
    %c5_84 = arith.constant 5 : index
    %151 = memref.load %arg4[%c5_84] : memref<8xf32, #tpu.memory_space<smem>>
    %152 = vector.broadcast %151 : f32 to vector<2x16x16xf32>
    %153 = arith.addf %150, %152 : vector<2x16x16xf32>
    %cst_85 = arith.constant 5.000000e-01 : f32
    %154 = vector.broadcast %cst_85 : f32 to vector<2x16x16xf32>
    %155 = arith.mulf %154, %153 : vector<2x16x16xf32>
    %156 = math.tanh %155 : vector<2x16x16xf32>
    %cst_86 = arith.constant 5.000000e-01 : f32
    %157 = vector.broadcast %cst_86 : f32 to vector<2x16x16xf32>
    %158 = arith.mulf %157, %156 : vector<2x16x16xf32>
    %cst_87 = arith.constant 5.000000e-01 : f32
    %159 = vector.broadcast %cst_87 : f32 to vector<2x16x16xf32>
    %160 = arith.addf %158, %159 : vector<2x16x16xf32>
    %161 = arith.mulf %153, %160 : vector<2x16x16xf32>
    %c0_88 = arith.constant 0 : index
    %c5_89 = arith.constant 5 : index
    %c0_90 = arith.constant 0 : index
    %c0_91 = arith.constant 0 : index
    %162 = vector.load %arg5[%c0_88, %c5_89, %c0_90, %c0_91] : memref<2x8x16x16xf32, #tpu.memory_space<vmem>>, vector<2x1x16x16xf32>
    %163 = vector.shape_cast %162 : vector<2x1x16x16xf32> to vector<2x16x16xf32>
    %164 = vector.shape_cast %161 : vector<2x16x16xf32> to vector<2x1x16x16xf32>
    tpu.vector_store %arg5[%c0_88, %c5_89, %c0_90, %c0_91], %164 {strides = array<i32>} : memref<2x8x16x16xf32, #tpu.memory_space<vmem>>, vector<2x1x16x16xf32>,
    %c6 = arith.constant 6 : index
    %c0_92 = arith.constant 0 : index
    %165 = memref.load %arg3[%c6, %c0_92] : memref<8x3xf32, #tpu.memory_space<smem>>
    %166 = vector.broadcast %165 : f32 to vector<2x16x16xf32>
    %167 = arith.mulf %166, %12 : vector<2x16x16xf32>
    %c6_93 = arith.constant 6 : index
    %c1_94 = arith.constant 1 : index
    %168 = memref.load %arg3[%c6_93, %c1_94] : memref<8x3xf32, #tpu.memory_space<smem>>
    %169 = vector.broadcast %168 : f32 to vector<2x16x16xf32>
    %170 = arith.mulf %169, %13 : vector<2x16x16xf32>
    %171 = arith.addf %167, %170 : vector<2x16x16xf32>
    %c6_95 = arith.constant 6 : index
    %c2_96 = arith.constant 2 : index
    %172 = memref.load %arg3[%c6_95, %c2_96] : memref<8x3xf32, #tpu.memory_space<smem>>
    %173 = vector.broadcast %172 : f32 to vector<2x16x16xf32>
    %174 = arith.mulf %173, %14 : vector<2x16x16xf32>
    %175 = arith.addf %171, %174 : vector<2x16x16xf32>
    %c6_97 = arith.constant 6 : index
    %176 = memref.load %arg4[%c6_97] : memref<8xf32, #tpu.memory_space<smem>>
    %177 = vector.broadcast %176 : f32 to vector<2x16x16xf32>
    %178 = arith.addf %175, %177 : vector<2x16x16xf32>
    %cst_98 = arith.constant 5.000000e-01 : f32
    %179 = vector.broadcast %cst_98 : f32 to vector<2x16x16xf32>
    %180 = arith.mulf %179, %178 : vector<2x16x16xf32>
    %181 = math.tanh %180 : vector<2x16x16xf32>
    %cst_99 = arith.constant 5.000000e-01 : f32
    %182 = vector.broadcast %cst_99 : f32 to vector<2x16x16xf32>
    %183 = arith.mulf %182, %181 : vector<2x16x16xf32>
    %cst_100 = arith.constant 5.000000e-01 : f32
    %184 = vector.broadcast %cst_100 : f32 to vector<2x16x16xf32>
    %185 = arith.addf %183, %184 : vector<2x16x16xf32>
    %186 = arith.mulf %178, %185 : vector<2x16x16xf32>
    %c0_101 = arith.constant 0 : index
    %c6_102 = arith.constant 6 : index
    %c0_103 = arith.constant 0 : index
    %c0_104 = arith.constant 0 : index
    %187 = vector.load %arg5[%c0_101, %c6_102, %c0_103, %c0_104] : memref<2x8x16x16xf32, #tpu.memory_space<vmem>>, vector<2x1x16x16xf32>
    %188 = vector.shape_cast %187 : vector<2x1x16x16xf32> to vector<2x16x16xf32>
    %189 = vector.shape_cast %186 : vector<2x16x16xf32> to vector<2x1x16x16xf32>
    tpu.vector_store %arg5[%c0_101, %c6_102, %c0_103, %c0_104], %189 {strides = array<i32>} : memref<2x8x16x16xf32, #tpu.memory_space<vmem>>, vector<2x1x16x16xf32>,
    %c7 = arith.constant 7 : index
    %c0_105 = arith.constant 0 : index
    %190 = memref.load %arg3[%c7, %c0_105] : memref<8x3xf32, #tpu.memory_space<smem>>
    %191 = vector.broadcast %190 : f32 to vector<2x16x16xf32>
    %192 = arith.mulf %191, %12 : vector<2x16x16xf32>
    %c7_106 = arith.constant 7 : index
    %c1_107 = arith.constant 1 : index
    %193 = memref.load %arg3[%c7_106, %c1_107] : memref<8x3xf32, #tpu.memory_space<smem>>
    %194 = vector.broadcast %193 : f32 to vector<2x16x16xf32>
    %195 = arith.mulf %194, %13 : vector<2x16x16xf32>
    %196 = arith.addf %192, %195 : vector<2x16x16xf32>
    %c7_108 = arith.constant 7 : index
    %c2_109 = arith.constant 2 : index
    %197 = memref.load %arg3[%c7_108, %c2_109] : memref<8x3xf32, #tpu.memory_space<smem>>
    %198 = vector.broadcast %197 : f32 to vector<2x16x16xf32>
    %199 = arith.mulf %198, %14 : vector<2x16x16xf32>
    %200 = arith.addf %196, %199 : vector<2x16x16xf32>
    %c7_110 = arith.constant 7 : index
    %201 = memref.load %arg4[%c7_110] : memref<8xf32, #tpu.memory_space<smem>>
    %202 = vector.broadcast %201 : f32 to vector<2x16x16xf32>
    %203 = arith.addf %200, %202 : vector<2x16x16xf32>
    %cst_111 = arith.constant 5.000000e-01 : f32
    %204 = vector.broadcast %cst_111 : f32 to vector<2x16x16xf32>
    %205 = arith.mulf %204, %203 : vector<2x16x16xf32>
    %206 = math.tanh %205 : vector<2x16x16xf32>
    %cst_112 = arith.constant 5.000000e-01 : f32
    %207 = vector.broadcast %cst_112 : f32 to vector<2x16x16xf32>
    %208 = arith.mulf %207, %206 : vector<2x16x16xf32>
    %cst_113 = arith.constant 5.000000e-01 : f32
    %209 = vector.broadcast %cst_113 : f32 to vector<2x16x16xf32>
    %210 = arith.addf %208, %209 : vector<2x16x16xf32>
    %211 = arith.mulf %203, %210 : vector<2x16x16xf32>
    %c0_114 = arith.constant 0 : index
    %c7_115 = arith.constant 7 : index
    %c0_116 = arith.constant 0 : index
    %c0_117 = arith.constant 0 : index
    %212 = vector.load %arg5[%c0_114, %c7_115, %c0_116, %c0_117] : memref<2x8x16x16xf32, #tpu.memory_space<vmem>>, vector<2x1x16x16xf32>
    %213 = vector.shape_cast %212 : vector<2x1x16x16xf32> to vector<2x16x16xf32>
    %214 = vector.shape_cast %211 : vector<2x16x16xf32> to vector<2x1x16x16xf32>
    tpu.vector_store %arg5[%c0_114, %c7_115, %c0_116, %c0_117], %214 {strides = array<i32>} : memref<2x8x16x16xf32, #tpu.memory_space<vmem>>, vector<2x1x16x16xf32>,
    return
  }
  func.func @transform_0(%arg0: i32, %arg1: i32) -> (i32, i32, i32, i32) {
    %c0_i32 = arith.constant 0 : i32
    %c0_i32_0 = arith.constant 0 : i32
    %c0_i32_1 = arith.constant 0 : i32
    return %arg0, %c0_i32, %arg1, %c0_i32_0 : i32, i32, i32, i32
  }
  func.func @transform_1(%arg0: i32, %arg1: i32) -> (i32, i32) {
    %c0_i32 = arith.constant 0 : i32
    %c0_i32_0 = arith.constant 0 : i32
    %c0_i32_1 = arith.constant 0 : i32
    return %c0_i32, %c0_i32_0 : i32, i32
  }
  func.func @transform_2(%arg0: i32, %arg1: i32) -> i32 {
    %c0_i32 = arith.constant 0 : i32
    %c0_i32_0 = arith.constant 0 : i32
    return %c0_i32 : i32
  }
  func.func @transform_3(%arg0: i32, %arg1: i32) -> (i32, i32, i32, i32) {
    %c0_i32 = arith.constant 0 : i32
    %c0_i32_0 = arith.constant 0 : i32
    %c0_i32_1 = arith.constant 0 : i32
    return %arg0, %c0_i32, %arg1, %c0_i32_0 : i32, i32, i32, i32
  }
}

</mosaic_0001>

<llo_original>
// kernel: tpu_custom_call.1
$region0: #{tpu_custom_call.1}
  #allocation0 [shape = 'u32[]', space=smem, size = 0x4, offset = 0x4, fixed_abs, tag = 'smem constant byte address 0x4 - core index']
  #allocation1 [shape = 'u32[144,128]{1,0:T(1,128)}', space=vmem, size = 0x12000, scoped, tag = 'internal scratch']
  %s0 = inlined_call_operand.hbm [shape: f32[2,4,16,16], index: 0, kind: input, shape index: {}]
  %s1 = inlined_call_operand.vmem [shape: f32[8,3], index: 1, kind: input, shape index: {}]
  %s2 = inlined_call_operand.vmem [shape: f32[8], index: 2, kind: input, shape index: {}]
  %s3 = inlined_call_operand.hbm [shape: f32[2,8,16,16], index: 3, kind: output, shape index: {}]
  %s4 = sld [smem:[#allocation0]]
  $region34: #{tpu_custom_call.1} parent=0
    _
  %s6 = ssub.s32 1, %s4
  %s7 = scalar_select 0, %s6, %s4
  $region1: #{tpu_custom_call.1} parent=0
    #allocation2 [shape = 'u8[65536]{0}', space=vmem, size = 0x10000, scoped, tag = 'input window, operand 0, single buffered']
    #allocation3 [shape = 's32[1]{0}', space=sflag, size = 0x4, scoped, tag = 'scoped memory for tpu_custom_call.1']
    #allocation4 [shape = 's32[1]{0}', space=sflag, size = 0x4, scoped, tag = 'scoped memory for tpu_custom_call.1']
    #allocation5 [shape = 's32[1]{0}', space=sflag, size = 0x4, scoped, tag = 'scoped memory for tpu_custom_call.1']
    #allocation6 [shape = 'u8[4096]{0}', space=smem, size = 0x1000, scoped, tag = 'input window, operand 1, single buffered']
    #allocation7 [shape = 'u8[512]{0}', space=smem, size = 0x200, scoped, tag = 'input window, operand 2, single buffered']
    #allocation8 [shape = 's32[1]{0}', space=sflag, size = 0x4, scoped, tag = 'scoped memory for tpu_custom_call.1']
    #allocation9 [shape = 'u8[131072]{0}', space=vmem, size = 0x20000, scoped, tag = 'output window, operand 0, single buffered']
    %8 = vsyncpa [#allocation3], 0
    %9 = vsyncpa [#allocation5], 0
    %10 = vsyncpa [#allocation8], 0
    %11 = vsyncpa [#allocation4], 0
    // Predicated region
    $region2: #{tpu_custom_call.1} parent=1 // pred_check
      _
    $region3: #{tpu_custom_call.1} parent=1 // pred_check_branch
      %13 = sbr.rel (0) target = $region5
    $region4: #{tpu_custom_call.1} parent=1 // pred_region
      %s15 = ssub.s32 2048, 2048
      %16 = vsyncadd [#allocation3], %s15
      %s17 = sshll.u32 [#allocation2], 4
      %s18 = int_to_ptr.vmem [resolvable:$true] %s17
      %23 = dma.hbm_to_vmem [thread:$0]  %s0, 2048, %s18, [#allocation3], 128, 128, 8
    $region5: #{tpu_custom_call.1} parent=1 // pred_fallthru
      _
    // Predicated region
    $region6: #{tpu_custom_call.1} parent=1 // pred_check
      _
    $region7: #{tpu_custom_call.1} parent=1 // pred_check_branch
      %25 = sbr.rel (0) target = $region9
    $region8: #{tpu_custom_call.1} parent=1 // pred_region
      %s27 = ssub.s32 128, 128
      %28 = vsyncadd [#allocation5], %s27
      %s30 = sshll.u32 %s1, 4
      %s31 = int_to_ptr.vmem [resolvable:$true] %s30
      %33 = dma.vmem_to_smem %s31, 128, [#allocation6], [#allocation5]
    $region9: #{tpu_custom_call.1} parent=1 // pred_fallthru
      _
    // Predicated region
    $region10: #{tpu_custom_call.1} parent=1 // pred_check
      _
    $region11: #{tpu_custom_call.1} parent=1 // pred_check_branch
      %35 = sbr.rel (0) target = $region13
    $region12: #{tpu_custom_call.1} parent=1 // pred_region
      %s37 = ssub.s32 16, 16
      %38 = vsyncadd [#allocation8], %s37
      %s40 = sshll.u32 %s2, 4
      %s41 = int_to_ptr.vmem [resolvable:$true] %s40
      %43 = dma.vmem_to_smem %s41, 16, [#allocation7], [#allocation8]
    $region13: #{tpu_custom_call.1} parent=1 // pred_fallthru
      _
    // Predicated region
    $region14: #{tpu_custom_call.1} parent=1 // pred_check
      _
    $region15: #{tpu_custom_call.1} parent=1 // pred_check_branch
      %45 = sbr.rel (0) target = $region17
    $region16: #{tpu_custom_call.1} parent=1 // pred_region
      %46 = dma.done [#allocation3], 2048
    $region17: #{tpu_custom_call.1} parent=1 // pred_fallthru
      _
    // Predicated region
    $region18: #{tpu_custom_call.1} parent=1 // pred_check
      _
    $region19: #{tpu_custom_call.1} parent=1 // pred_check_branch
      %48 = sbr.rel (0) target = $region21
    $region20: #{tpu_custom_call.1} parent=1 // pred_region
      %49 = dma.done [#allocation5], 128
    $region21: #{tpu_custom_call.1} parent=1 // pred_fallthru
      _
    // Predicated region
    $region22: #{tpu_custom_call.1} parent=1 // pred_check
      _
    $region23: #{tpu_custom_call.1} parent=1 // pred_check_branch
      %51 = sbr.rel (0) target = $region25
    $region24: #{tpu_custom_call.1} parent=1 // pred_region
      %52 = dma.done [#allocation8], 16
    $region25: #{tpu_custom_call.1} parent=1 // pred_fallthru
      _
    %53 = sfence
    %v54 = vld [vmem:[#allocation2] sm:$0xff]
    %v55 = vld [vmem:[#allocation2 + $0x8] sm:$0xff]
    %v56 = vld [vmem:[#allocation2 + $0x40] sm:$0xff]
    %v57 = vld [vmem:[#allocation2 + $0x48] sm:$0xff]
    %s58 = scalar_lea.vmem [#allocation2], 16
    %v59 = vld [vmem:[%s58] sm:$0xff]
    %v60 = vld [vmem:[%s58 + $0x8] sm:$0xff]
    %v61 = vld [vmem:[%s58 + $0x40] sm:$0xff]
    %v62 = vld [vmem:[%s58 + $0x48] sm:$0xff]
    %s63 = scalar_lea.vmem [#allocation2], 32
    %v64 = vld [vmem:[%s63] sm:$0xff]
    %v65 = vld [vmem:[%s63 + $0x8] sm:$0xff]
    %v66 = vld [vmem:[%s63 + $0x40] sm:$0xff]
    %v67 = vld [vmem:[%s63 + $0x48] sm:$0xff]
    %v68 = vsub.f32 %v59, %v54
    %v69 = vsub.f32 %v60, %v55
    %v70 = vsub.f32 %v61, %v56
    %v71 = vsub.f32 %v62, %v57
    %vm72 = vcmp.gt.f32.partialorder %v68, 0.0392
    %vm73 = vcmp.gt.f32.partialorder %v69, 0.0392
    %vm74 = vcmp.gt.f32.partialorder %v70, 0.0392
    %vm75 = vcmp.gt.f32.partialorder %v71, 0.0392
    %v76 = vsel %vm72, 1.2, 1.0
    %v77 = vsel %vm73, 1.2, 1.0
    %v78 = vsel %vm74, 1.2, 1.0
    %v79 = vsel %vm75, 1.2, 1.0
    %v80 = vmul.f32 %v54, %v76
    %v81 = vmul.f32 %v55, %v77
    %v82 = vmul.f32 %v56, %v78
    %v83 = vmul.f32 %v57, %v79
    %v84 = vmul.f32 %v59, %v76
    %v85 = vmul.f32 %v60, %v77
    %v86 = vmul.f32 %v61, %v78
    %v87 = vmul.f32 %v62, %v79
    %v88 = vmul.f32 %v64, %v76
    %v89 = vmul.f32 %v65, %v77
    %v90 = vmul.f32 %v66, %v78
    %v91 = vmul.f32 %v67, %v79
    %s92 = sld [smem:[#allocation6]]
    %v93 = vstv %s92
    %v94 = vmul.f32 %v93, %v80
    %v95 = vmul.f32 %v93, %v81
    %v96 = vmul.f32 %v93, %v82
    %v97 = vmul.f32 %v93, %v83
    %s98 = sld [smem:[#allocation6 + $0x1]]
    %v99 = vstv %s98
    %v100 = vmul.f32 %v99, %v84
    %v101 = vmul.f32 %v99, %v85
    %v102 = vmul.f32 %v99, %v86
    %v103 = vmul.f32 %v99, %v87
    %v104 = vadd.f32 %v94, %v100
    %v105 = vadd.f32 %v95, %v101
    %v106 = vadd.f32 %v96, %v102
    %v107 = vadd.f32 %v97, %v103
    %s108 = sld [smem:[#allocation6 + $0x2]]
    %v109 = vstv %s108
    %v110 = vmul.f32 %v109, %v88
    %v111 = vmul.f32 %v109, %v89
    %v112 = vmul.f32 %v109, %v90
    %v113 = vmul.f32 %v109, %v91
    %v114 = vadd.f32 %v104, %v110
    %v115 = vadd.f32 %v105, %v111
    %v116 = vadd.f32 %v106, %v112
    %v117 = vadd.f32 %v107, %v113
    %s118 = sld [smem:[#allocation7]]
    %v119 = vstv %s118
    %v120 = vadd.f32 %v114, %v119
    %v121 = vadd.f32 %v115, %v119
    %v122 = vadd.f32 %v116, %v119
    %v123 = vadd.f32 %v117, %v119
    %v124 = vmul.f32 %v120, 0.5
    %v125 = vmul.f32 %v121, 0.5
    %v126 = vmul.f32 %v122, 0.5
    %v127 = vmul.f32 %v123, 0.5
    %v128 = vtanh.pop %v124
    %v129 = vtanh.pop %v125
    %v130 = vtanh.pop %v126
    %v131 = vtanh.pop %v127
    %v132 = vmul.f32 %v128, 0.5
    %v133 = vmul.f32 %v129, 0.5
    %v134 = vmul.f32 %v130, 0.5
    %v135 = vmul.f32 %v131, 0.5
    %v136 = vadd.f32 %v132, 0.5
    %v137 = vadd.f32 %v133, 0.5
    %v138 = vadd.f32 %v134, 0.5
    %v139 = vadd.f32 %v135, 0.5
    %v140 = vmul.f32 %v120, %v136
    %v141 = vmul.f32 %v121, %v137
    %v142 = vmul.f32 %v122, %v138
    %v143 = vmul.f32 %v123, %v139
    %vm144 = vcmask 130048
    %145 = vst.msk [vmem:[#allocation9] sm:$0xff] %vm144, %v140
    %146 = vst.msk [vmem:[#allocation9 + $0x8] sm:$0xff] %vm144, %v141
    %147 = vst.msk [vmem:[#allocation9 + $0x80] sm:$0xff] %vm144, %v142
    %148 = vst.msk [vmem:[#allocation9 + $0x88] sm:$0xff] %vm144, %v143
    %s149 = sld [smem:[#allocation6 + $0x80]]
    %v150 = vstv %s149
    %v151 = vmul.f32 %v150, %v80
    %v152 = vmul.f32 %v150, %v81
    %v153 = vmul.f32 %v150, %v82
    %v154 = vmul.f32 %v150, %v83
    %s155 = sld [smem:[#allocation6 + $0x81]]
    %v156 = vstv %s155
    %v157 = vmul.f32 %v156, %v84
    %v158 = vmul.f32 %v156, %v85
    %v159 = vmul.f32 %v156, %v86
    %v160 = vmul.f32 %v156, %v87
    %v161 = vadd.f32 %v151, %v157
    %v162 = vadd.f32 %v152, %v158
    %v163 = vadd.f32 %v153, %v159
    %v164 = vadd.f32 %v154, %v160
    %s165 = sld [smem:[#allocation6 + $0x82]]
    %v166 = vstv %s165
    %v167 = vmul.f32 %v166, %v88
    %v168 = vmul.f32 %v166, %v89
    %v169 = vmul.f32 %v166, %v90
    %v170 = vmul.f32 %v166, %v91
    %v171 = vadd.f32 %v161, %v167
    %v172 = vadd.f32 %v162, %v168
    %v173 = vadd.f32 %v163, %v169
    %v174 = vadd.f32 %v164, %v170
    %s175 = sld [smem:[#allocation7 + $0x1]]
    %v176 = vstv %s175
    %v177 = vadd.f32 %v171, %v176
    %v178 = vadd.f32 %v172, %v176
    %v179 = vadd.f32 %v173, %v176
    %v180 = vadd.f32 %v174, %v176
    %v181 = vmul.f32 %v177, 0.5
    %v182 = vmul.f32 %v178, 0.5
    %v183 = vmul.f32 %v179, 0.5
    %v184 = vmul.f32 %v180, 0.5
    %v185 = vtanh.pop %v181
    %v186 = vtanh.pop %v182
    %v187 = vtanh.pop %v183
    %v188 = vtanh.pop %v184
    %v189 = vmul.f32 %v185, 0.5
    %v190 = vmul.f32 %v186, 0.5
    %v191 = vmul.f32 %v187, 0.5
    %v192 = vmul.f32 %v188, 0.5
    %v193 = vadd.f32 %v189, 0.5
    %v194 = vadd.f32 %v190, 0.5
    %v195 = vadd.f32 %v191, 0.5
    %v196 = vadd.f32 %v192, 0.5
    %v197 = vmul.f32 %v177, %v193
    %v198 = vmul.f32 %v178, %v194
    %v199 = vmul.f32 %v179, %v195
    %v200 = vmul.f32 %v180, %v196
    %s201 = scalar_lea.vmem [#allocation9], 16
    %202 = vst.msk [vmem:[%s201] sm:$0xff] %vm144, %v197
    %203 = vst.msk [vmem:[%s201 + $0x8] sm:$0xff] %vm144, %v198
    %204 = vst.msk [vmem:[%s201 + $0x80] sm:$0xff] %vm144, %v199
    %205 = vst.msk [vmem:[%s201 + $0x88] sm:$0xff] %vm144, %v200
    %s206 = sld [smem:[#allocation6 + $0x100]]
    %v207 = vstv %s206
    %v208 = vmul.f32 %v207, %v80
    %v209 = vmul.f32 %v207, %v81
    %v210 = vmul.f32 %v207, %v82
    %v211 = vmul.f32 %v207, %v83
    %s212 = sld [smem:[#allocation6 + $0x101]]
    %v213 = vstv %s212
    %v214 = vmul.f32 %v213, %v84
    %v215 = vmul.f32 %v213, %v85
    %v216 = vmul.f32 %v213, %v86
    %v217 = vmul.f32 %v213, %v87
    %v218 = vadd.f32 %v208, %v214
    %v219 = vadd.f32 %v209, %v215
    %v220 = vadd.f32 %v210, %v216
    %v221 = vadd.f32 %v211, %v217
    %s222 = sld [smem:[#allocation6 + $0x102]]
    %v223 = vstv %s222
    %v224 = vmul.f32 %v223, %v88
    %v225 = vmul.f32 %v223, %v89
    %v226 = vmul.f32 %v223, %v90
    %v227 = vmul.f32 %v223, %v91
    %v228 = vadd.f32 %v218, %v224
    %v229 = vadd.f32 %v219, %v225
    %v230 = vadd.f32 %v220, %v226
    %v231 = vadd.f32 %v221, %v227
    %s232 = sld [smem:[#allocation7 + $0x2]]
    %v233 = vstv %s232
    %v234 = vadd.f32 %v228, %v233
    %v235 = vadd.f32 %v229, %v233
    %v236 = vadd.f32 %v230, %v233
    %v237 = vadd.f32 %v231, %v233
    %v238 = vmul.f32 %v234, 0.5
    %v239 = vmul.f32 %v235, 0.5
    %v240 = vmul.f32 %v236, 0.5
    %v241 = vmul.f32 %v237, 0.5
    %v242 = vtanh.pop %v238
    %v243 = vtanh.pop %v239
    %v244 = vtanh.pop %v240
    %v245 = vtanh.pop %v241
    %v246 = vmul.f32 %v242, 0.5
    %v247 = vmul.f32 %v243, 0.5
    %v248 = vmul.f32 %v244, 0.5
    %v249 = vmul.f32 %v245, 0.5
    %v250 = vadd.f32 %v246, 0.5
    %v251 = vadd.f32 %v247, 0.5
    %v252 = vadd.f32 %v248, 0.5
    %v253 = vadd.f32 %v249, 0.5
    %v254 = vmul.f32 %v234, %v250
    %v255 = vmul.f32 %v235, %v251
    %v256 = vmul.f32 %v236, %v252
    %v257 = vmul.f32 %v237, %v253
    %s258 = scalar_lea.vmem [#allocation9], 32
    %259 = vst.msk [vmem:[%s258] sm:$0xff] %vm144, %v254
    %260 = vst.msk [vmem:[%s258 + $0x8] sm:$0xff] %vm144, %v255
    %261 = vst.msk [vmem:[%s258 + $0x80] sm:$0xff] %vm144, %v256
    %262 = vst.msk [vmem:[%s258 + $0x88] sm:$0xff] %vm144, %v257
    %s263 = sld [smem:[#allocation6 + $0x180]]
    %v264 = vstv %s263
    %v265 = vmul.f32 %v264, %v80
    %v266 = vmul.f32 %v264, %v81
    %v267 = vmul.f32 %v264, %v82
    %v268 = vmul.f32 %v264, %v83
    %s269 = sld [smem:[#allocation6 + $0x181]]
    %v270 = vstv %s269
    %v271 = vmul.f32 %v270, %v84
    %v272 = vmul.f32 %v270, %v85
    %v273 = vmul.f32 %v270, %v86
    %v274 = vmul.f32 %v270, %v87
    %v275 = vadd.f32 %v265, %v271
    %v276 = vadd.f32 %v266, %v272
    %v277 = vadd.f32 %v267, %v273
    %v278 = vadd.f32 %v268, %v274
    %s279 = sld [smem:[#allocation6 + $0x182]]
    %v280 = vstv %s279
    %v281 = vmul.f32 %v280, %v88
    %v282 = vmul.f32 %v280, %v89
    %v283 = vmul.f32 %v280, %v90
    %v284 = vmul.f32 %v280, %v91
    %v285 = vadd.f32 %v275, %v281
    %v286 = vadd.f32 %v276, %v282
    %v287 = vadd.f32 %v277, %v283
    %v288 = vadd.f32 %v278, %v284
    %s289 = sld [smem:[#allocation7 + $0x3]]
    %v290 = vstv %s289
    %v291 = vadd.f32 %v285, %v290
    %v292 = vadd.f32 %v286, %v290
    %v293 = vadd.f32 %v287, %v290
    %v294 = vadd.f32 %v288, %v290
    %v295 = vmul.f32 %v291, 0.5
    %v296 = vmul.f32 %v292, 0.5
    %v297 = vmul.f32 %v293, 0.5
    %v298 = vmul.f32 %v294, 0.5
    %v299 = vtanh.pop %v295
    %v300 = vtanh.pop %v296
    %v301 = vtanh.pop %v297
    %v302 = vtanh.pop %v298
    %v303 = vmul.f32 %v299, 0.5
    %v304 = vmul.f32 %v300, 0.5
    %v305 = vmul.f32 %v301, 0.5
    %v306 = vmul.f32 %v302, 0.5
    %v307 = vadd.f32 %v303, 0.5
    %v308 = vadd.f32 %v304, 0.5
    %v309 = vadd.f32 %v305, 0.5
    %v310 = vadd.f32 %v306, 0.5
    %v311 = vmul.f32 %v291, %v307
    %v312 = vmul.f32 %v292, %v308
    %v313 = vmul.f32 %v293, %v309
    %v314 = vmul.f32 %v294, %v310
    %s315 = scalar_lea.vmem [#allocation9], 48
    %316 = vst.msk [vmem:[%s315] sm:$0xff] %vm144, %v311
    %317 = vst.msk [vmem:[%s315 + $0x8] sm:$0xff] %vm144, %v312
    %318 = vst.msk [vmem:[%s315 + $0x80] sm:$0xff] %vm144, %v313
    %319 = vst.msk [vmem:[%s315 + $0x88] sm:$0xff] %vm144, %v314
    %s320 = sld [smem:[#allocation6 + $0x200]]
    %v321 = vstv %s320
    %v322 = vmul.f32 %v321, %v80
    %v323 = vmul.f32 %v321, %v81
    %v324 = vmul.f32 %v321, %v82
    %v325 = vmul.f32 %v321, %v83
    %s326 = sld [smem:[#allocation6 + $0x201]]
    %v327 = vstv %s326
    %v328 = vmul.f32 %v327, %v84
    %v329 = vmul.f32 %v327, %v85
    %v330 = vmul.f32 %v327, %v86
    %v331 = vmul.f32 %v327, %v87
    %v332 = vadd.f32 %v322, %v328
    %v333 = vadd.f32 %v323, %v329
    %v334 = vadd.f32 %v324, %v330
    %v335 = vadd.f32 %v325, %v331
    %s336 = sld [smem:[#allocation6 + $0x202]]
    %v337 = vstv %s336
    %v338 = vmul.f32 %v337, %v88
    %v339 = vmul.f32 %v337, %v89
    %v340 = vmul.f32 %v337, %v90
    %v341 = vmul.f32 %v337, %v91
    %v342 = vadd.f32 %v332, %v338
    %v343 = vadd.f32 %v333, %v339
    %v344 = vadd.f32 %v334, %v340
    %v345 = vadd.f32 %v335, %v341
    %s346 = sld [smem:[#allocation7 + $0x4]]
    %v347 = vstv %s346
    %v348 = vadd.f32 %v342, %v347
    %v349 = vadd.f32 %v343, %v347
    %v350 = vadd.f32 %v344, %v347
    %v351 = vadd.f32 %v345, %v347
    %v352 = vmul.f32 %v348, 0.5
    %v353 = vmul.f32 %v349, 0.5
    %v354 = vmul.f32 %v350, 0.5
    %v355 = vmul.f32 %v351, 0.5
    %v356 = vtanh.pop %v352
    %v357 = vtanh.pop %v353
    %v358 = vtanh.pop %v354
    %v359 = vtanh.pop %v355
    %v360 = vmul.f32 %v356, 0.5
    %v361 = vmul.f32 %v357, 0.5
    %v362 = vmul.f32 %v358, 0.5
    %v363 = vmul.f32 %v359, 0.5
    %v364 = vadd.f32 %v360, 0.5
    %v365 = vadd.f32 %v361, 0.5
    %v366 = vadd.f32 %v362, 0.5
    %v367 = vadd.f32 %v363, 0.5
    %v368 = vmul.f32 %v348, %v364
    %v369 = vmul.f32 %v349, %v365
    %v370 = vmul.f32 %v350, %v366
    %v371 = vmul.f32 %v351, %v367
    %s372 = scalar_lea.vmem [#allocation9], 64
    %373 = vst.msk [vmem:[%s372] sm:$0xff] %vm144, %v368
    %374 = vst.msk [vmem:[%s372 + $0x8] sm:$0xff] %vm144, %v369
    %375 = vst.msk [vmem:[%s372 + $0x80] sm:$0xff] %vm144, %v370
    %376 = vst.msk [vmem:[%s372 + $0x88] sm:$0xff] %vm144, %v371
    %s377 = sld [smem:[#allocation6 + $0x280]]
    %v378 = vstv %s377
    %v379 = vmul.f32 %v378, %v80
    %v380 = vmul.f32 %v378, %v81
    %v381 = vmul.f32 %v378, %v82
    %v382 = vmul.f32 %v378, %v83
    %s383 = sld [smem:[#allocation6 + $0x281]]
    %v384 = vstv %s383
    %v385 = vmul.f32 %v384, %v84
    %v386 = vmul.f32 %v384, %v85
    %v387 = vmul.f32 %v384, %v86
    %v388 = vmul.f32 %v384, %v87
    %v389 = vadd.f32 %v379, %v385
    %v390 = vadd.f32 %v380, %v386
    %v391 = vadd.f32 %v381, %v387
    %v392 = vadd.f32 %v382, %v388
    %s393 = sld [smem:[#allocation6 + $0x282]]
    %v394 = vstv %s393
    %v395 = vmul.f32 %v394, %v88
    %v396 = vmul.f32 %v394, %v89
    %v397 = vmul.f32 %v394, %v90
    %v398 = vmul.f32 %v394, %v91
    %v399 = vadd.f32 %v389, %v395
    %v400 = vadd.f32 %v390, %v396
    %v401 = vadd.f32 %v391, %v397
    %v402 = vadd.f32 %v392, %v398
    %s403 = sld [smem:[#allocation7 + $0x5]]
    %v404 = vstv %s403
    %v405 = vadd.f32 %v399, %v404
    %v406 = vadd.f32 %v400, %v404
    %v407 = vadd.f32 %v401, %v404
    %v408 = vadd.f32 %v402, %v404
    %v409 = vmul.f32 %v405, 0.5
    %v410 = vmul.f32 %v406, 0.5
    %v411 = vmul.f32 %v407, 0.5
    %v412 = vmul.f32 %v408, 0.5
    %v413 = vtanh.pop %v409
    %v414 = vtanh.pop %v410
    %v415 = vtanh.pop %v411
    %v416 = vtanh.pop %v412
    %v417 = vmul.f32 %v413, 0.5
    %v418 = vmul.f32 %v414, 0.5
    %v419 = vmul.f32 %v415, 0.5
    %v420 = vmul.f32 %v416, 0.5
    %v421 = vadd.f32 %v417, 0.5
    %v422 = vadd.f32 %v418, 0.5
    %v423 = vadd.f32 %v419, 0.5
    %v424 = vadd.f32 %v420, 0.5
    %v425 = vmul.f32 %v405, %v421
    %v426 = vmul.f32 %v406, %v422
    %v427 = vmul.f32 %v407, %v423
    %v428 = vmul.f32 %v408, %v424
    %s429 = scalar_lea.vmem [#allocation9], 80
    %430 = vst.msk [vmem:[%s429] sm:$0xff] %vm144, %v425
    %431 = vst.msk [vmem:[%s429 + $0x8] sm:$0xff] %vm144, %v426
    %432 = vst.msk [vmem:[%s429 + $0x80] sm:$0xff] %vm144, %v427
    %433 = vst.msk [vmem:[%s429 + $0x88] sm:$0xff] %vm144, %v428
    %s434 = sld [smem:[#allocation6 + $0x300]]
    %v435 = vstv %s434
    %v436 = vmul.f32 %v435, %v80
    %v437 = vmul.f32 %v435, %v81
    %v438 = vmul.f32 %v435, %v82
    %v439 = vmul.f32 %v435, %v83
    %s440 = sld [smem:[#allocation6 + $0x301]]
    %v441 = vstv %s440
    %v442 = vmul.f32 %v441, %v84
    %v443 = vmul.f32 %v441, %v85
    %v444 = vmul.f32 %v441, %v86
    %v445 = vmul.f32 %v441, %v87
    %v446 = vadd.f32 %v436, %v442
    %v447 = vadd.f32 %v437, %v443
    %v448 = vadd.f32 %v438, %v444
    %v449 = vadd.f32 %v439, %v445
    %s450 = sld [smem:[#allocation6 + $0x302]]
    %v451 = vstv %s450
    %v452 = vmul.f32 %v451, %v88
    %v453 = vmul.f32 %v451, %v89
    %v454 = vmul.f32 %v451, %v90
    %v455 = vmul.f32 %v451, %v91
    %v456 = vadd.f32 %v446, %v452
    %v457 = vadd.f32 %v447, %v453
    %v458 = vadd.f32 %v448, %v454
    %v459 = vadd.f32 %v449, %v455
    %s460 = sld [smem:[#allocation7 + $0x6]]
    %v461 = vstv %s460
    %v462 = vadd.f32 %v456, %v461
    %v463 = vadd.f32 %v457, %v461
    %v464 = vadd.f32 %v458, %v461
    %v465 = vadd.f32 %v459, %v461
    %v466 = vmul.f32 %v462, 0.5
    %v467 = vmul.f32 %v463, 0.5
    %v468 = vmul.f32 %v464, 0.5
    %v469 = vmul.f32 %v465, 0.5
    %v470 = vtanh.pop %v466
    %v471 = vtanh.pop %v467
    %v472 = vtanh.pop %v468
    %v473 = vtanh.pop %v469
    %v474 = vmul.f32 %v470, 0.5
    %v475 = vmul.f32 %v471, 0.5
    %v476 = vmul.f32 %v472, 0.5
    %v477 = vmul.f32 %v473, 0.5
    %v478 = vadd.f32 %v474, 0.5
    %v479 = vadd.f32 %v475, 0.5
    %v480 = vadd.f32 %v476, 0.5
    %v481 = vadd.f32 %v477, 0.5
    %v482 = vmul.f32 %v462, %v478
    %v483 = vmul.f32 %v463, %v479
    %v484 = vmul.f32 %v464, %v480
    %v485 = vmul.f32 %v465, %v481
    %s486 = scalar_lea.vmem [#allocation9], 96
    %487 = vst.msk [vmem:[%s486] sm:$0xff] %vm144, %v482
    %488 = vst.msk [vmem:[%s486 + $0x8] sm:$0xff] %vm144, %v483
    %489 = vst.msk [vmem:[%s486 + $0x80] sm:$0xff] %vm144, %v484
    %490 = vst.msk [vmem:[%s486 + $0x88] sm:$0xff] %vm144, %v485
    %s491 = sld [smem:[#allocation6 + $0x380]]
    %v492 = vstv %s491
    %v493 = vmul.f32 %v492, %v80
    %v494 = vmul.f32 %v492, %v81
    %v495 = vmul.f32 %v492, %v82
    %v496 = vmul.f32 %v492, %v83
    %s497 = sld [smem:[#allocation6 + $0x381]]
    %v498 = vstv %s497
    %v499 = vmul.f32 %v498, %v84
    %v500 = vmul.f32 %v498, %v85
    %v501 = vmul.f32 %v498, %v86
    %v502 = vmul.f32 %v498, %v87
    %v503 = vadd.f32 %v493, %v499
    %v504 = vadd.f32 %v494, %v500
    %v505 = vadd.f32 %v495, %v501
    %v506 = vadd.f32 %v496, %v502
    %s507 = sld [smem:[#allocation6 + $0x382]]
    %v508 = vstv %s507
    %v509 = vmul.f32 %v508, %v88
    %v510 = vmul.f32 %v508, %v89
    %v511 = vmul.f32 %v508, %v90
    %v512 = vmul.f32 %v508, %v91
    %v513 = vadd.f32 %v503, %v509
    %v514 = vadd.f32 %v504, %v510
    %v515 = vadd.f32 %v505, %v511
    %v516 = vadd.f32 %v506, %v512
    %s517 = sld [smem:[#allocation7 + $0x7]]
    %v518 = vstv %s517
    %v519 = vadd.f32 %v513, %v518
    %v520 = vadd.f32 %v514, %v518
    %v521 = vadd.f32 %v515, %v518
    %v522 = vadd.f32 %v516, %v518
    %v523 = vmul.f32 %v519, 0.5
    %v524 = vmul.f32 %v520, 0.5
    %v525 = vmul.f32 %v521, 0.5
    %v526 = vmul.f32 %v522, 0.5
    %v527 = vtanh.pop %v523
    %v528 = vtanh.pop %v524
    %v529 = vtanh.pop %v525
    %v530 = vtanh.pop %v526
    %v531 = vmul.f32 %v527, 0.5
    %v532 = vmul.f32 %v528, 0.5
    %v533 = vmul.f32 %v529, 0.5
    %v534 = vmul.f32 %v530, 0.5
    %v535 = vadd.f32 %v531, 0.5
    %v536 = vadd.f32 %v532, 0.5
    %v537 = vadd.f32 %v533, 0.5
    %v538 = vadd.f32 %v534, 0.5
    %v539 = vmul.f32 %v519, %v535
    %v540 = vmul.f32 %v520, %v536
    %v541 = vmul.f32 %v521, %v537
    %v542 = vmul.f32 %v522, %v538
    %s543 = scalar_lea.vmem [#allocation9], 112
    %544 = vst.msk [vmem:[%s543] sm:$0xff] %vm144, %v539
    %545 = vst.msk [vmem:[%s543 + $0x8] sm:$0xff] %vm144, %v540
    %546 = vst.msk [vmem:[%s543 + $0x80] sm:$0xff] %vm144, %v541
    %547 = vst.msk [vmem:[%s543 + $0x88] sm:$0xff] %vm144, %v542
    // Predicated region
    $region26: #{tpu_custom_call.1} parent=1 // pred_check
      _
    $region27: #{tpu_custom_call.1} parent=1 // pred_check_branch
      %549 = sbr.rel (0) target = $region29
    $region28: #{tpu_custom_call.1} parent=1 // pred_region
      %s551 = ssub.s32 4096, 4096
      %552 = vsyncadd [#allocation4], %s551
      %s553 = sshll.u32 [#allocation9], 4
      %s554 = int_to_ptr.vmem [resolvable:$true] %s553
      %559 = dma.vmem_to_hbm [thread:$0]  %s554, 4096, %s3, [#allocation4], 128, 128, 8
    $region29: #{tpu_custom_call.1} parent=1 // pred_fallthru
      _
    // Predicated region
    $region30: #{tpu_custom_call.1} parent=1 // pred_check
      _
    $region31: #{tpu_custom_call.1} parent=1 // pred_check_branch
      %561 = sbr.rel (0) target = $region33
    $region32: #{tpu_custom_call.1} parent=1 // pred_region
      %562 = dma.done [#allocation4], 4096
    $region33: #{tpu_custom_call.1} parent=1 // pred_fallthru
      _
    %563 = vsyncpa [#allocation3], 1
    %564 = vsyncpa [#allocation4], 1
    %565 = vsyncpa [#allocation5], 1
    %566 = vsyncpa [#allocation8], 1

</llo_original>
